<compile_context>
chip_gen: v7x
topology: tpu7x:2x2x1
jax: 0.10.0
libtpu: 0.0.40
codegen_flags: <defaults>
</compile_context>

<pallas_src>
import jax
import jax.numpy as jnp
from jax.experimental import pallas as pl
from jax.experimental.pallas import tpu as pltpu

N_ACTIONS = 2
N_INPUTS = 4
H1, H2, H3 = 64, 128, 64


def actor_critic_fwd_kernel(x_ref, w1_ref, b1_ref, w2_ref, b2_ref, w3_ref, b3_ref, o_ref):
    x = x_ref[...]                     # [tile_b, 4]  f32
    w1 = w1_ref[...]                   # [4, 64]      f32

    # linear1 + relu: K=4 -> 4 broadcast mul-adds on the VPU, exact f32.
    h = x[:, 0:1] * w1[0:1, :]
    for j in range(1, N_INPUTS):
        h = h + x[:, j:j + 1] * w1[j:j + 1, :]
    h = jnp.maximum(h + b1_ref[...], 0.0)                        # [tile_b, 64] f32

    # linear2 + relu  (bf16 MXU operands, f32 accumulation)
    h = jnp.dot(h.astype(jnp.bfloat16), w2_ref[...],
                preferred_element_type=jnp.float32) + b2_ref[...]
    h = jnp.maximum(h, 0.0)                                      # [tile_b, 128] f32

    # linear3 + relu
    h = jnp.dot(h.astype(jnp.bfloat16), w3_ref[...],
                preferred_element_type=jnp.float32) + b3_ref[...]
    h = jnp.maximum(h, 0.0)                                      # [tile_b, 64] f32

    o_ref[...] = h.astype(o_ref.dtype)


def prepare_params(params):
    """One-time (per weight update) dtype/shape prep, hoisted out of the call path."""
    w1, b1, w2, b2, w3, b3 = params  # weights already in [in, out] layout
    return (w1.astype(jnp.float32),            # layer 1 stays f32 (VPU path, exact)
            b1.reshape(1, H1).astype(jnp.float32),
            w2.astype(jnp.bfloat16),
            b2.reshape(1, H2).astype(jnp.float32),
            w3.astype(jnp.bfloat16),
            b3.reshape(1, H3).astype(jnp.float32))


def actor_critic_forward(x, prepared, *, max_tile_b=4096):
    """Pallas forward: x [B, 4] f32 -> features [B, 64] f32."""
    w1, b1, w2, b2, w3, b3 = prepared
    B = x.shape[0]

    if B <= max_tile_b:
        # Single tile: block == full array, no batch padding, no per-step overhead.
        tile_b, n_blocks, Bp = B, 1, B
    else:
        tile_b = max_tile_b                      # multiple of 8, fits scoped VMEM on v5e+
        n_blocks = pl.cdiv(B, tile_b)
        Bp = n_blocks * tile_b

    xp = x.astype(jnp.float32)
    if Bp != B:
        xp = jnp.pad(xp, ((0, Bp - B), (0, 0)))  # padded rows compute relu(b), sliced off

    cost = pl.CostEstimate(
        flops=2 * Bp * (N_INPUTS * H1 + H1 * H2 + H2 * H3),
        transcendentals=0,
        bytes_accessed=(Bp * N_INPUTS * 4 + Bp * H3 * 4            # x read + out write
                        + N_INPUTS * H1 * 4 + H1 * H2 * 2 + H2 * H3 * 2   # weights
                        + (H1 + H2 + H3) * 4),                     # biases
    )

    out = pl.pallas_call(
        actor_critic_fwd_kernel,
        out_shape=jax.ShapeDtypeStruct((Bp, H3), jnp.float32),
        grid_spec=pl.GridSpec(
            grid=(n_blocks,),
            in_specs=[
                pl.BlockSpec((tile_b, N_INPUTS), lambda i: (i, 0)),  # x tile (unpadded, 16 B/row)
                pl.BlockSpec((N_INPUTS, H1), lambda i: (0, 0)),      # w1 (resident across tiles)
                pl.BlockSpec((1, H1), lambda i: (0, 0)),             # b1
                pl.BlockSpec((H1, H2), lambda i: (0, 0)),            # w2
                pl.BlockSpec((1, H2), lambda i: (0, 0)),             # b2
                pl.BlockSpec((H2, H3), lambda i: (0, 0)),            # w3
                pl.BlockSpec((1, H3), lambda i: (0, 0)),             # b3
            ],
            out_specs=pl.BlockSpec((tile_b, H3), lambda i: (i, 0)),  # [tile_b, 64] f32
        ),
        compiler_params=pltpu.CompilerParams(
            dimension_semantics=("parallel",),   # batch tiles shard across TCs on v7x
        ),
        cost_estimate=cost,
    )(xp, w1, b1, w2, b2, w3, b3)

    return out if Bp == B else out[:B]


def init_params(key):
    """Deterministic init mimicking nn.Linear default U(-1/sqrt(fan_in), 1/sqrt(fan_in)).
    Weights returned in [in, out] layout (i.e. PyTorch W.T)."""
    def linear(key, fan_in, fan_out):
        kw, kb = jax.random.split(key)
        bound = 1.0 / jnp.sqrt(fan_in)
        w = jax.random.uniform(kw, (fan_in, fan_out), jnp.float32, -bound, bound)
        b = jax.random.uniform(kb, (fan_out,), jnp.float32, -bound, bound)
        return w, b

    k1, k2, k3, k4, k5 = jax.random.split(key, 5)
    w1, b1 = linear(k1, N_INPUTS, H1)
    w2, b2 = linear(k2, H1, H2)
    w3, b3 = linear(k3, H2, H3)
    # actor / critic heads exist in the module's __init__ but are not used in forward()
    wa, ba = linear(k4, H3, N_ACTIONS)
    wc, bc = linear(k5, H3, 1)
    return (w1, b1, w2, b2, w3, b3), (wa, ba, wc, bc)


def reference_forward(x, params):
    """Pure-JAX f32 reference matching the PyTorch forward()."""
    w1, b1, w2, b2, w3, b3 = params
    h = jnp.maximum(x @ w1 + b1, 0.0)
    h = jnp.maximum(h @ w2 + b2, 0.0)
    h = jnp.maximum(h @ w3 + b3, 0.0)
    return h


if __name__ == "__main__":
    key = jax.random.PRNGKey(0)
    kx, kp = jax.random.split(key)

    B = 256  # batch of CartPole-like state vectors (N_INPUTS=4) -> single 256-row tile
    x = jax.random.normal(kx, (B, N_INPUTS), jnp.float32)

    body_params, _head_params = init_params(kp)
    prepared = prepare_params(body_params)       # hoisted weight prep (once per update)

    fwd = jax.jit(actor_critic_forward)          # params passed as args, not baked in
    out = jax.block_until_ready(fwd(x, prepared))

    ref = reference_forward(x, body_params)
    assert out.shape == (B, H3)
    # layers 2/3 use bf16 MXU operands (f32 accumulation) -> relaxed tolerance vs f32 ref.
    assert jnp.allclose(out, ref, atol=5e-2, rtol=5e-2), \
        f"max abs diff {jnp.max(jnp.abs(out - ref))}"

    print("KERNEL_OK")
</pallas_src>

<mosaic_0001>
module attributes {stable_mosaic.version = 11 : i64} {
  func.func @actor_critic_fwd_kernel(%arg0: i32, %arg1: memref<256x4xf32, #tpu.memory_space<vmem>>, %arg2: memref<4x64xf32, #tpu.memory_space<vmem>>, %arg3: memref<1x64xf32, #tpu.memory_space<vmem>>, %arg4: memref<64x128xbf16, #tpu.memory_space<vmem>>, %arg5: memref<1x128xf32, #tpu.memory_space<vmem>>, %arg6: memref<128x64xbf16, #tpu.memory_space<vmem>>, %arg7: memref<1x64xf32, #tpu.memory_space<vmem>>, %arg8: memref<256x64xf32, #tpu.memory_space<vmem>>) attributes {dimension_semantics = [#tpu.dimension_semantics<parallel>], iteration_bounds = array<i64: 1>, scalar_prefetch = 0 : i64, scratch_operands = 0 : i64, tpu.core_type = #tpu.core_type<tc>, window_params = [{transform_indices = @transform_0, window_bounds = array<i64: 256, 4>}, {pipeline_mode = #tpu.pipeline_mode<synchronous>, transform_indices = @transform_1, window_bounds = array<i64: 4, 64>}, {pipeline_mode = #tpu.pipeline_mode<synchronous>, transform_indices = @transform_2, window_bounds = array<i64: 1, 64>}, {pipeline_mode = #tpu.pipeline_mode<synchronous>, transform_indices = @transform_3, window_bounds = array<i64: 64, 128>}, {pipeline_mode = #tpu.pipeline_mode<synchronous>, transform_indices = @transform_4, window_bounds = array<i64: 1, 128>}, {pipeline_mode = #tpu.pipeline_mode<synchronous>, transform_indices = @transform_5, window_bounds = array<i64: 128, 64>}, {pipeline_mode = #tpu.pipeline_mode<synchronous>, transform_indices = @transform_6, window_bounds = array<i64: 1, 64>}, {transform_indices = @transform_7, window_bounds = array<i64: 256, 64>}]} {
    %c0 = arith.constant 0 : index
    %c0_0 = arith.constant 0 : index
    %0 = vector.load %arg1[%c0, %c0_0] : memref<256x4xf32, #tpu.memory_space<vmem>>, vector<256x4xf32>
    %c0_1 = arith.constant 0 : index
    %c0_2 = arith.constant 0 : index
    %1 = vector.load %arg2[%c0_1, %c0_2] : memref<4x64xf32, #tpu.memory_space<vmem>>, vector<4x64xf32>
    %2 = vector.extract_strided_slice %0 {offsets = [0, 0], sizes = [256, 1], strides = [1, 1]} : vector<256x4xf32> to vector<256x1xf32>
    %3 = vector.extract_strided_slice %1 {offsets = [0, 0], sizes = [1, 64], strides = [1, 1]} : vector<4x64xf32> to vector<1x64xf32>
    %4 = vector.broadcast %2 : vector<256x1xf32> to vector<256x64xf32>
    %5 = vector.broadcast %3 : vector<1x64xf32> to vector<256x64xf32>
    %6 = arith.mulf %4, %5 : vector<256x64xf32>
    %7 = vector.extract_strided_slice %0 {offsets = [0, 1], sizes = [256, 1], strides = [1, 1]} : vector<256x4xf32> to vector<256x1xf32>
    %8 = vector.extract_strided_slice %1 {offsets = [1, 0], sizes = [1, 64], strides = [1, 1]} : vector<4x64xf32> to vector<1x64xf32>
    %9 = vector.broadcast %7 : vector<256x1xf32> to vector<256x64xf32>
    %10 = vector.broadcast %8 : vector<1x64xf32> to vector<256x64xf32>
    %11 = arith.mulf %9, %10 : vector<256x64xf32>
    %12 = arith.addf %6, %11 : vector<256x64xf32>
    %13 = vector.extract_strided_slice %0 {offsets = [0, 2], sizes = [256, 1], strides = [1, 1]} : vector<256x4xf32> to vector<256x1xf32>
    %14 = vector.extract_strided_slice %1 {offsets = [2, 0], sizes = [1, 64], strides = [1, 1]} : vector<4x64xf32> to vector<1x64xf32>
    %15 = vector.broadcast %13 : vector<256x1xf32> to vector<256x64xf32>
    %16 = vector.broadcast %14 : vector<1x64xf32> to vector<256x64xf32>
    %17 = arith.mulf %15, %16 : vector<256x64xf32>
    %18 = arith.addf %12, %17 : vector<256x64xf32>
    %19 = vector.extract_strided_slice %0 {offsets = [0, 3], sizes = [256, 1], strides = [1, 1]} : vector<256x4xf32> to vector<256x1xf32>
    %20 = vector.extract_strided_slice %1 {offsets = [3, 0], sizes = [1, 64], strides = [1, 1]} : vector<4x64xf32> to vector<1x64xf32>
    %21 = vector.broadcast %19 : vector<256x1xf32> to vector<256x64xf32>
    %22 = vector.broadcast %20 : vector<1x64xf32> to vector<256x64xf32>
    %23 = arith.mulf %21, %22 : vector<256x64xf32>
    %24 = arith.addf %18, %23 : vector<256x64xf32>
    %c0_3 = arith.constant 0 : index
    %c0_4 = arith.constant 0 : index
    %25 = vector.load %arg3[%c0_3, %c0_4] : memref<1x64xf32, #tpu.memory_space<vmem>>, vector<1x64xf32>
    %26 = vector.broadcast %25 : vector<1x64xf32> to vector<256x64xf32>
    %27 = arith.addf %24, %26 : vector<256x64xf32>
    %cst = arith.constant 0.000000e+00 : f32
    %28 = vector.broadcast %cst : f32 to vector<256x64xf32>
    %29 = arith.maximumf %27, %28 : vector<256x64xf32>
    %30 = arith.truncf %29 : vector<256x64xf32> to vector<256x64xbf16>
    %c0_5 = arith.constant 0 : index
    %c0_6 = arith.constant 0 : index
    %31 = vector.load %arg4[%c0_5, %c0_6] : memref<64x128xbf16, #tpu.memory_space<vmem>>, vector<64x128xbf16>
    %cst_7 = arith.constant dense<0.000000e+00> : vector<256x128xf32>
    %32 = tpu.matmul %30, %31, %cst_7 {dimension_numbers = #tpu.dot_dimension_numbers<[1], [0], [0], [1], [0, 0, 1, 1], [], []>} : vector<256x64xbf16>, vector<64x128xbf16>, vector<256x128xf32> -> vector<256x128xf32>
    %c0_8 = arith.constant 0 : index
    %c0_9 = arith.constant 0 : index
    %33 = vector.load %arg5[%c0_8, %c0_9] : memref<1x128xf32, #tpu.memory_space<vmem>>, vector<1x128xf32>
    %34 = vector.broadcast %33 : vector<1x128xf32> to vector<256x128xf32>
    %35 = arith.addf %32, %34 : vector<256x128xf32>
    %cst_10 = arith.constant 0.000000e+00 : f32
    %36 = vector.broadcast %cst_10 : f32 to vector<256x128xf32>
    %37 = arith.maximumf %35, %36 : vector<256x128xf32>
    %38 = arith.truncf %37 : vector<256x128xf32> to vector<256x128xbf16>
    %c0_11 = arith.constant 0 : index
    %c0_12 = arith.constant 0 : index
    %39 = vector.load %arg6[%c0_11, %c0_12] : memref<128x64xbf16, #tpu.memory_space<vmem>>, vector<128x64xbf16>
    %cst_13 = arith.constant dense<0.000000e+00> : vector<256x64xf32>
    %40 = tpu.matmul %38, %39, %cst_13 {dimension_numbers = #tpu.dot_dimension_numbers<[1], [0], [0], [1], [0, 0, 1, 1], [], []>} : vector<256x128xbf16>, vector<128x64xbf16>, vector<256x64xf32> -> vector<256x64xf32>
    %c0_14 = arith.constant 0 : index
    %c0_15 = arith.constant 0 : index
    %41 = vector.load %arg7[%c0_14, %c0_15] : memref<1x64xf32, #tpu.memory_space<vmem>>, vector<1x64xf32>
    %42 = vector.broadcast %41 : vector<1x64xf32> to vector<256x64xf32>
    %43 = arith.addf %40, %42 : vector<256x64xf32>
    %cst_16 = arith.constant 0.000000e+00 : f32
    %44 = vector.broadcast %cst_16 : f32 to vector<256x64xf32>
    %45 = arith.maximumf %43, %44 : vector<256x64xf32>
    %c0_17 = arith.constant 0 : index
    %c0_18 = arith.constant 0 : index
    %46 = vector.load %arg8[%c0_17, %c0_18] : memref<256x64xf32, #tpu.memory_space<vmem>>, vector<256x64xf32>
    tpu.vector_store %arg8[%c0_17, %c0_18], %45 {strides = array<i32>} : memref<256x64xf32, #tpu.memory_space<vmem>>, vector<256x64xf32>,
    return
  }
  func.func @transform_0(%arg0: i32) -> (i32, i32) {
    %c0_i32 = arith.constant 0 : i32
    %c0_i32_0 = arith.constant 0 : i32
    return %arg0, %c0_i32 : i32, i32
  }
  func.func @transform_1(%arg0: i32) -> (i32, i32) {
    %c0_i32 = arith.constant 0 : i32
    %c0_i32_0 = arith.constant 0 : i32
    %c0_i32_1 = arith.constant 0 : i32
    return %c0_i32, %c0_i32_0 : i32, i32
  }
  func.func @transform_2(%arg0: i32) -> (i32, i32) {
    %c0_i32 = arith.constant 0 : i32
    %c0_i32_0 = arith.constant 0 : i32
    %c0_i32_1 = arith.constant 0 : i32
    return %c0_i32, %c0_i32_0 : i32, i32
  }
  func.func @transform_3(%arg0: i32) -> (i32, i32) {
    %c0_i32 = arith.constant 0 : i32
    %c0_i32_0 = arith.constant 0 : i32
    %c0_i32_1 = arith.constant 0 : i32
    return %c0_i32, %c0_i32_0 : i32, i32
  }
  func.func @transform_4(%arg0: i32) -> (i32, i32) {
    %c0_i32 = arith.constant 0 : i32
    %c0_i32_0 = arith.constant 0 : i32
    %c0_i32_1 = arith.constant 0 : i32
    return %c0_i32, %c0_i32_0 : i32, i32
  }
  func.func @transform_5(%arg0: i32) -> (i32, i32) {
    %c0_i32 = arith.constant 0 : i32
    %c0_i32_0 = arith.constant 0 : i32
    %c0_i32_1 = arith.constant 0 : i32
    return %c0_i32, %c0_i32_0 : i32, i32
  }
  func.func @transform_6(%arg0: i32) -> (i32, i32) {
    %c0_i32 = arith.constant 0 : i32
    %c0_i32_0 = arith.constant 0 : i32
    %c0_i32_1 = arith.constant 0 : i32
    return %c0_i32, %c0_i32_0 : i32, i32
  }
  func.func @transform_7(%arg0: i32) -> (i32, i32) {
    %c0_i32 = arith.constant 0 : i32
    %c0_i32_0 = arith.constant 0 : i32
    return %arg0, %c0_i32 : i32, i32
  }
}

</mosaic_0001>

<llo_original>
// kernel: actor_critic_forward.1
$region0: #{actor_critic_forward.1}
  #allocation0 [shape = 'u32[]', space=smem, size = 0x4, offset = 0x4, fixed_abs, tag = 'smem constant byte address 0x4 - core index']
  #allocation1 [shape = 'u32[144,128]{1,0:T(1,128)}', space=vmem, size = 0x12000, scoped, tag = 'internal scratch']
  %s0 = inlined_call_operand.vmem [shape: f32[256,4], index: 0, kind: input, shape index: {}]
  %s1 = inlined_call_operand.vmem [shape: f32[4,64], index: 1, kind: input, shape index: {}]
  %s2 = inlined_call_operand.vmem [shape: f32[1,64], index: 2, kind: input, shape index: {}]
  %s3 = inlined_call_operand.vmem [shape: bf16[64,128], index: 3, kind: input, shape index: {}]
  %s4 = inlined_call_operand.vmem [shape: f32[1,128], index: 4, kind: input, shape index: {}]
  %s5 = inlined_call_operand.vmem [shape: bf16[128,64], index: 5, kind: input, shape index: {}]
  %s6 = inlined_call_operand.vmem [shape: f32[1,64], index: 6, kind: input, shape index: {}]
  %s7 = inlined_call_operand.vmem [shape: f32[256,64], index: 7, kind: output, shape index: {}]
  %s8 = sld [smem:[#allocation0]]
  $region38: #{actor_critic_forward.1} parent=0
    _
  %s10 = ssub.s32 1, %s8
  %s11 = scalar_select 0, %s10, %s8
  // Predicated region
  $region2: #{actor_critic_forward.1} parent=0 // pred_check
    _
  $region3: #{actor_critic_forward.1} parent=0 // pred_check_branch
    %13 = sbr.rel (0) target = $region5
  $region4: #{actor_critic_forward.1} parent=0 // pred_region
    _
  $region5: #{actor_critic_forward.1} parent=0 // pred_fallthru
    _
  // Predicated region
  $region6: #{actor_critic_forward.1} parent=0 // pred_check
    _
  $region7: #{actor_critic_forward.1} parent=0 // pred_check_branch
    %15 = sbr.rel (0) target = $region9
  $region8: #{actor_critic_forward.1} parent=0 // pred_region
    _
  $region9: #{actor_critic_forward.1} parent=0 // pred_fallthru
    _
  // Predicated region
  $region10: #{actor_critic_forward.1} parent=0 // pred_check
    _
  $region11: #{actor_critic_forward.1} parent=0 // pred_check_branch
    %17 = sbr.rel (0) target = $region13
  $region12: #{actor_critic_forward.1} parent=0 // pred_region
    _
  $region13: #{actor_critic_forward.1} parent=0 // pred_fallthru
    _
  // Predicated region
  $region14: #{actor_critic_forward.1} parent=0 // pred_check
    _
  $region15: #{actor_critic_forward.1} parent=0 // pred_check_branch
    %19 = sbr.rel (0) target = $region17
  $region16: #{actor_critic_forward.1} parent=0 // pred_region
    _
  $region17: #{actor_critic_forward.1} parent=0 // pred_fallthru
    _
  // Predicated region
  $region18: #{actor_critic_forward.1} parent=0 // pred_check
    _
  $region19: #{actor_critic_forward.1} parent=0 // pred_check_branch
    %21 = sbr.rel (0) target = $region21
  $region20: #{actor_critic_forward.1} parent=0 // pred_region
    _
  $region21: #{actor_critic_forward.1} parent=0 // pred_fallthru
    _
  // Predicated region
  $region22: #{actor_critic_forward.1} parent=0 // pred_check
    _
  $region23: #{actor_critic_forward.1} parent=0 // pred_check_branch
    %23 = sbr.rel (0) target = $region25
  $region24: #{actor_critic_forward.1} parent=0 // pred_region
    _
  $region25: #{actor_critic_forward.1} parent=0 // pred_fallthru
    _
  // Predicated region
  $region26: #{actor_critic_forward.1} parent=0 // pred_check
    _
  $region27: #{actor_critic_forward.1} parent=0 // pred_check_branch
    %25 = sbr.rel (0) target = $region29
  $region28: #{actor_critic_forward.1} parent=0 // pred_region
    _
  $region29: #{actor_critic_forward.1} parent=0 // pred_fallthru
    _
  %v27 = vld [vmem:[%s0] sm:$0xff]
  %v28 = vld [vmem:[%s0 + $0x8] sm:$0xff]
  %v29 = vld [vmem:[%s0 + $0x10] sm:$0xff]
  %v30 = vld [vmem:[%s0 + $0x18] sm:$0xff]
  %v31 = vld [vmem:[%s0 + $0x20] sm:$0xff]
  %v32 = vld [vmem:[%s0 + $0x28] sm:$0xff]
  %v33 = vld [vmem:[%s0 + $0x30] sm:$0xff]
  %v34 = vld [vmem:[%s0 + $0x38] sm:$0xff]
  %v35 = vld [vmem:[%s0 + $0x40] sm:$0xff]
  %v36 = vld [vmem:[%s0 + $0x48] sm:$0xff]
  %v37 = vld [vmem:[%s0 + $0x50] sm:$0xff]
  %v38 = vld [vmem:[%s0 + $0x58] sm:$0xff]
  %v39 = vld [vmem:[%s0 + $0x60] sm:$0xff]
  %v40 = vld [vmem:[%s0 + $0x68] sm:$0xff]
  %v41 = vld [vmem:[%s0 + $0x70] sm:$0xff]
  %v42 = vld [vmem:[%s0 + $0x78] sm:$0xff]
  %v43 = vld [vmem:[%s0 + $0x80] sm:$0xff]
  %v44 = vld [vmem:[%s0 + $0x88] sm:$0xff]
  %v45 = vld [vmem:[%s0 + $0x90] sm:$0xff]
  %v46 = vld [vmem:[%s0 + $0x98] sm:$0xff]
  %v47 = vld [vmem:[%s0 + $0xa0] sm:$0xff]
  %v48 = vld [vmem:[%s0 + $0xa8] sm:$0xff]
  %v49 = vld [vmem:[%s0 + $0xb0] sm:$0xff]
  %v50 = vld [vmem:[%s0 + $0xb8] sm:$0xff]
  %v51 = vld [vmem:[%s0 + $0xc0] sm:$0xff]
  %v52 = vld [vmem:[%s0 + $0xc8] sm:$0xff]
  %v53 = vld [vmem:[%s0 + $0xd0] sm:$0xff]
  %v54 = vld [vmem:[%s0 + $0xd8] sm:$0xff]
  %v55 = vld [vmem:[%s0 + $0xe0] sm:$0xff]
  %v56 = vld [vmem:[%s0 + $0xe8] sm:$0xff]
  %v57 = vld [vmem:[%s0 + $0xf0] sm:$0xff]
  %v58 = vld [vmem:[%s0 + $0xf8] sm:$0xff]
  %v59 = vld [vmem:[%s1] sm:$0xf]
  %61 = vset.pattern.permute.xlu0 0
  %62 = vperm.xlu0 %61, %v27
  %v63 = vpop.permute.xlu0 %62
  %66 = vset.pattern.permute.xlu0 0
  %67 = vperm.xlu0 %66, %v28
  %v68 = vpop.permute.xlu0 %67
  %71 = vset.pattern.permute.xlu0 0
  %72 = vperm.xlu0 %71, %v29
  %v73 = vpop.permute.xlu0 %72
  %76 = vset.pattern.permute.xlu0 0
  %77 = vperm.xlu0 %76, %v30
  %v78 = vpop.permute.xlu0 %77
  %81 = vset.pattern.permute.xlu0 0
  %82 = vperm.xlu0 %81, %v31
  %v83 = vpop.permute.xlu0 %82
  %86 = vset.pattern.permute.xlu0 0
  %87 = vperm.xlu0 %86, %v32
  %v88 = vpop.permute.xlu0 %87
  %91 = vset.pattern.permute.xlu0 0
  %92 = vperm.xlu0 %91, %v33
  %v93 = vpop.permute.xlu0 %92
  %96 = vset.pattern.permute.xlu0 0
  %97 = vperm.xlu0 %96, %v34
  %v98 = vpop.permute.xlu0 %97
  %101 = vset.pattern.permute.xlu0 0
  %102 = vperm.xlu0 %101, %v35
  %v103 = vpop.permute.xlu0 %102
  %106 = vset.pattern.permute.xlu0 0
  %107 = vperm.xlu0 %106, %v36
  %v108 = vpop.permute.xlu0 %107
  %111 = vset.pattern.permute.xlu0 0
  %112 = vperm.xlu0 %111, %v37
  %v113 = vpop.permute.xlu0 %112
  %116 = vset.pattern.permute.xlu0 0
  %117 = vperm.xlu0 %116, %v38
  %v118 = vpop.permute.xlu0 %117
  %121 = vset.pattern.permute.xlu0 0
  %122 = vperm.xlu0 %121, %v39
  %v123 = vpop.permute.xlu0 %122
  %126 = vset.pattern.permute.xlu0 0
  %127 = vperm.xlu0 %126, %v40
  %v128 = vpop.permute.xlu0 %127
  %131 = vset.pattern.permute.xlu0 0
  %132 = vperm.xlu0 %131, %v41
  %v133 = vpop.permute.xlu0 %132
  %136 = vset.pattern.permute.xlu0 0
  %137 = vperm.xlu0 %136, %v42
  %v138 = vpop.permute.xlu0 %137
  %141 = vset.pattern.permute.xlu0 0
  %142 = vperm.xlu0 %141, %v43
  %v143 = vpop.permute.xlu0 %142
  %146 = vset.pattern.permute.xlu0 0
  %147 = vperm.xlu0 %146, %v44
  %v148 = vpop.permute.xlu0 %147
  %151 = vset.pattern.permute.xlu0 0
  %152 = vperm.xlu0 %151, %v45
  %v153 = vpop.permute.xlu0 %152
  %156 = vset.pattern.permute.xlu0 0
  %157 = vperm.xlu0 %156, %v46
  %v158 = vpop.permute.xlu0 %157
  %161 = vset.pattern.permute.xlu0 0
  %162 = vperm.xlu0 %161, %v47
  %v163 = vpop.permute.xlu0 %162
  %166 = vset.pattern.permute.xlu0 0
  %167 = vperm.xlu0 %166, %v48
  %v168 = vpop.permute.xlu0 %167
  %171 = vset.pattern.permute.xlu0 0
  %172 = vperm.xlu0 %171, %v49
  %v173 = vpop.permute.xlu0 %172
  %176 = vset.pattern.permute.xlu0 0
  %177 = vperm.xlu0 %176, %v50
  %v178 = vpop.permute.xlu0 %177
  %181 = vset.pattern.permute.xlu0 0
  %182 = vperm.xlu0 %181, %v51
  %v183 = vpop.permute.xlu0 %182
  %186 = vset.pattern.permute.xlu0 0
  %187 = vperm.xlu0 %186, %v52
  %v188 = vpop.permute.xlu0 %187
  %191 = vset.pattern.permute.xlu0 0
  %192 = vperm.xlu0 %191, %v53
  %v193 = vpop.permute.xlu0 %192
  %196 = vset.pattern.permute.xlu0 0
  %197 = vperm.xlu0 %196, %v54
  %v198 = vpop.permute.xlu0 %197
  %201 = vset.pattern.permute.xlu0 0
  %202 = vperm.xlu0 %201, %v55
  %v203 = vpop.permute.xlu0 %202
  %206 = vset.pattern.permute.xlu0 0
  %207 = vperm.xlu0 %206, %v56
  %v208 = vpop.permute.xlu0 %207
  %211 = vset.pattern.permute.xlu0 0
  %212 = vperm.xlu0 %211, %v57
  %v213 = vpop.permute.xlu0 %212
  %216 = vset.pattern.permute.xlu0 0
  %217 = vperm.xlu0 %216, %v58
  %v218 = vpop.permute.xlu0 %217
  %v220 = vlaneseq
  %v221 = vshrl.u32 %v220, 7
  %v222 = vsub.s32 0, %v221
  %v223 = vrot.slane %v59, %v222
  %v224 = vmul.f32 %v63, %v223
  %v225 = vmul.f32 %v68, %v223
  %v226 = vmul.f32 %v73, %v223
  %v227 = vmul.f32 %v78, %v223
  %v228 = vmul.f32 %v83, %v223
  %v229 = vmul.f32 %v88, %v223
  %v230 = vmul.f32 %v93, %v223
  %v231 = vmul.f32 %v98, %v223
  %v232 = vmul.f32 %v103, %v223
  %v233 = vmul.f32 %v108, %v223
  %v234 = vmul.f32 %v113, %v223
  %v235 = vmul.f32 %v118, %v223
  %v236 = vmul.f32 %v123, %v223
  %v237 = vmul.f32 %v128, %v223
  %v238 = vmul.f32 %v133, %v223
  %v239 = vmul.f32 %v138, %v223
  %v240 = vmul.f32 %v143, %v223
  %v241 = vmul.f32 %v148, %v223
  %v242 = vmul.f32 %v153, %v223
  %v243 = vmul.f32 %v158, %v223
  %v244 = vmul.f32 %v163, %v223
  %v245 = vmul.f32 %v168, %v223
  %v246 = vmul.f32 %v173, %v223
  %v247 = vmul.f32 %v178, %v223
  %v248 = vmul.f32 %v183, %v223
  %v249 = vmul.f32 %v188, %v223
  %v250 = vmul.f32 %v193, %v223
  %v251 = vmul.f32 %v198, %v223
  %v252 = vmul.f32 %v203, %v223
  %v253 = vmul.f32 %v208, %v223
  %v254 = vmul.f32 %v213, %v223
  %v255 = vmul.f32 %v218, %v223
  %256 = vset.pattern.permute.xlu0 1
  %257 = vperm.xlu0 %256, %v27
  %v258 = vpop.permute.xlu0 %257
  %260 = vset.pattern.permute.xlu0 1
  %261 = vperm.xlu0 %260, %v28
  %v262 = vpop.permute.xlu0 %261
  %264 = vset.pattern.permute.xlu0 1
  %265 = vperm.xlu0 %264, %v29
  %v266 = vpop.permute.xlu0 %265
  %268 = vset.pattern.permute.xlu0 1
  %269 = vperm.xlu0 %268, %v30
  %v270 = vpop.permute.xlu0 %269
  %272 = vset.pattern.permute.xlu0 1
  %273 = vperm.xlu0 %272, %v31
  %v274 = vpop.permute.xlu0 %273
  %276 = vset.pattern.permute.xlu0 1
  %277 = vperm.xlu0 %276, %v32
  %v278 = vpop.permute.xlu0 %277
  %280 = vset.pattern.permute.xlu0 1
  %281 = vperm.xlu0 %280, %v33
  %v282 = vpop.permute.xlu0 %281
  %284 = vset.pattern.permute.xlu0 1
  %285 = vperm.xlu0 %284, %v34
  %v286 = vpop.permute.xlu0 %285
  %288 = vset.pattern.permute.xlu0 1
  %289 = vperm.xlu0 %288, %v35
  %v290 = vpop.permute.xlu0 %289
  %292 = vset.pattern.permute.xlu0 1
  %293 = vperm.xlu0 %292, %v36
  %v294 = vpop.permute.xlu0 %293
  %296 = vset.pattern.permute.xlu0 1
  %297 = vperm.xlu0 %296, %v37
  %v298 = vpop.permute.xlu0 %297
  %300 = vset.pattern.permute.xlu0 1
  %301 = vperm.xlu0 %300, %v38
  %v302 = vpop.permute.xlu0 %301
  %304 = vset.pattern.permute.xlu0 1
  %305 = vperm.xlu0 %304, %v39
  %v306 = vpop.permute.xlu0 %305
  %308 = vset.pattern.permute.xlu0 1
  %309 = vperm.xlu0 %308, %v40
  %v310 = vpop.permute.xlu0 %309
  %312 = vset.pattern.permute.xlu0 1
  %313 = vperm.xlu0 %312, %v41
  %v314 = vpop.permute.xlu0 %313
  %316 = vset.pattern.permute.xlu0 1
  %317 = vperm.xlu0 %316, %v42
  %v318 = vpop.permute.xlu0 %317
  %320 = vset.pattern.permute.xlu0 1
  %321 = vperm.xlu0 %320, %v43
  %v322 = vpop.permute.xlu0 %321
  %324 = vset.pattern.permute.xlu0 1
  %325 = vperm.xlu0 %324, %v44
  %v326 = vpop.permute.xlu0 %325
  %328 = vset.pattern.permute.xlu0 1
  %329 = vperm.xlu0 %328, %v45
  %v330 = vpop.permute.xlu0 %329
  %332 = vset.pattern.permute.xlu0 1
  %333 = vperm.xlu0 %332, %v46
  %v334 = vpop.permute.xlu0 %333
  %336 = vset.pattern.permute.xlu0 1
  %337 = vperm.xlu0 %336, %v47
  %v338 = vpop.permute.xlu0 %337
  %340 = vset.pattern.permute.xlu0 1
  %341 = vperm.xlu0 %340, %v48
  %v342 = vpop.permute.xlu0 %341
  %344 = vset.pattern.permute.xlu0 1
  %345 = vperm.xlu0 %344, %v49
  %v346 = vpop.permute.xlu0 %345
  %348 = vset.pattern.permute.xlu0 1
  %349 = vperm.xlu0 %348, %v50
  %v350 = vpop.permute.xlu0 %349
  %352 = vset.pattern.permute.xlu0 1
  %353 = vperm.xlu0 %352, %v51
  %v354 = vpop.permute.xlu0 %353
  %356 = vset.pattern.permute.xlu0 1
  %357 = vperm.xlu0 %356, %v52
  %v358 = vpop.permute.xlu0 %357
  %360 = vset.pattern.permute.xlu0 1
  %361 = vperm.xlu0 %360, %v53
  %v362 = vpop.permute.xlu0 %361
  %364 = vset.pattern.permute.xlu0 1
  %365 = vperm.xlu0 %364, %v54
  %v366 = vpop.permute.xlu0 %365
  %368 = vset.pattern.permute.xlu0 1
  %369 = vperm.xlu0 %368, %v55
  %v370 = vpop.permute.xlu0 %369
  %372 = vset.pattern.permute.xlu0 1
  %373 = vperm.xlu0 %372, %v56
  %v374 = vpop.permute.xlu0 %373
  %376 = vset.pattern.permute.xlu0 1
  %377 = vperm.xlu0 %376, %v57
  %v378 = vpop.permute.xlu0 %377
  %380 = vset.pattern.permute.xlu0 1
  %381 = vperm.xlu0 %380, %v58
  %v382 = vpop.permute.xlu0 %381
  %v384 = vlaneseq
  %v385 = vshrl.u32 %v384, 7
  %v386 = vsub.s32 1, %v385
  %v387 = vrot.slane %v59, %v386
  %v388 = vmul.f32 %v258, %v387
  %v389 = vmul.f32 %v262, %v387
  %v390 = vmul.f32 %v266, %v387
  %v391 = vmul.f32 %v270, %v387
  %v392 = vmul.f32 %v274, %v387
  %v393 = vmul.f32 %v278, %v387
  %v394 = vmul.f32 %v282, %v387
  %v395 = vmul.f32 %v286, %v387
  %v396 = vmul.f32 %v290, %v387
  %v397 = vmul.f32 %v294, %v387
  %v398 = vmul.f32 %v298, %v387
  %v399 = vmul.f32 %v302, %v387
  %v400 = vmul.f32 %v306, %v387
  %v401 = vmul.f32 %v310, %v387
  %v402 = vmul.f32 %v314, %v387
  %v403 = vmul.f32 %v318, %v387
  %v404 = vmul.f32 %v322, %v387
  %v405 = vmul.f32 %v326, %v387
  %v406 = vmul.f32 %v330, %v387
  %v407 = vmul.f32 %v334, %v387
  %v408 = vmul.f32 %v338, %v387
  %v409 = vmul.f32 %v342, %v387
  %v410 = vmul.f32 %v346, %v387
  %v411 = vmul.f32 %v350, %v387
  %v412 = vmul.f32 %v354, %v387
  %v413 = vmul.f32 %v358, %v387
  %v414 = vmul.f32 %v362, %v387
  %v415 = vmul.f32 %v366, %v387
  %v416 = vmul.f32 %v370, %v387
  %v417 = vmul.f32 %v374, %v387
  %v418 = vmul.f32 %v378, %v387
  %v419 = vmul.f32 %v382, %v387
  %v420 = vadd.f32 %v224, %v388
  %v421 = vadd.f32 %v225, %v389
  %v422 = vadd.f32 %v226, %v390
  %v423 = vadd.f32 %v227, %v391
  %v424 = vadd.f32 %v228, %v392
  %v425 = vadd.f32 %v229, %v393
  %v426 = vadd.f32 %v230, %v394
  %v427 = vadd.f32 %v231, %v395
  %v428 = vadd.f32 %v232, %v396
  %v429 = vadd.f32 %v233, %v397
  %v430 = vadd.f32 %v234, %v398
  %v431 = vadd.f32 %v235, %v399
  %v432 = vadd.f32 %v236, %v400
  %v433 = vadd.f32 %v237, %v401
  %v434 = vadd.f32 %v238, %v402
  %v435 = vadd.f32 %v239, %v403
  %v436 = vadd.f32 %v240, %v404
  %v437 = vadd.f32 %v241, %v405
  %v438 = vadd.f32 %v242, %v406
  %v439 = vadd.f32 %v243, %v407
  %v440 = vadd.f32 %v244, %v408
  %v441 = vadd.f32 %v245, %v409
  %v442 = vadd.f32 %v246, %v410
  %v443 = vadd.f32 %v247, %v411
  %v444 = vadd.f32 %v248, %v412
  %v445 = vadd.f32 %v249, %v413
  %v446 = vadd.f32 %v250, %v414
  %v447 = vadd.f32 %v251, %v415
  %v448 = vadd.f32 %v252, %v416
  %v449 = vadd.f32 %v253, %v417
  %v450 = vadd.f32 %v254, %v418
  %v451 = vadd.f32 %v255, %v419
  %452 = vset.pattern.permute.xlu0 2
  %453 = vperm.xlu0 %452, %v27
  %v454 = vpop.permute.xlu0 %453
  %456 = vset.pattern.permute.xlu0 2
  %457 = vperm.xlu0 %456, %v28
  %v458 = vpop.permute.xlu0 %457
  %460 = vset.pattern.permute.xlu0 2
  %461 = vperm.xlu0 %460, %v29
  %v462 = vpop.permute.xlu0 %461
  %464 = vset.pattern.permute.xlu0 2
  %465 = vperm.xlu0 %464, %v30
  %v466 = vpop.permute.xlu0 %465
  %468 = vset.pattern.permute.xlu0 2
  %469 = vperm.xlu0 %468, %v31
  %v470 = vpop.permute.xlu0 %469
  %472 = vset.pattern.permute.xlu0 2
  %473 = vperm.xlu0 %472, %v32
  %v474 = vpop.permute.xlu0 %473
  %476 = vset.pattern.permute.xlu0 2
  %477 = vperm.xlu0 %476, %v33
  %v478 = vpop.permute.xlu0 %477
  %480 = vset.pattern.permute.xlu0 2
  %481 = vperm.xlu0 %480, %v34
  %v482 = vpop.permute.xlu0 %481
  %484 = vset.pattern.permute.xlu0 2
  %485 = vperm.xlu0 %484, %v35
  %v486 = vpop.permute.xlu0 %485
  %488 = vset.pattern.permute.xlu0 2
  %489 = vperm.xlu0 %488, %v36
  %v490 = vpop.permute.xlu0 %489
  %492 = vset.pattern.permute.xlu0 2
  %493 = vperm.xlu0 %492, %v37
  %v494 = vpop.permute.xlu0 %493
  %496 = vset.pattern.permute.xlu0 2
  %497 = vperm.xlu0 %496, %v38
  %v498 = vpop.permute.xlu0 %497
  %500 = vset.pattern.permute.xlu0 2
  %501 = vperm.xlu0 %500, %v39
  %v502 = vpop.permute.xlu0 %501
  %504 = vset.pattern.permute.xlu0 2
  %505 = vperm.xlu0 %504, %v40
  %v506 = vpop.permute.xlu0 %505
  %508 = vset.pattern.permute.xlu0 2
  %509 = vperm.xlu0 %508, %v41
  %v510 = vpop.permute.xlu0 %509
  %512 = vset.pattern.permute.xlu0 2
  %513 = vperm.xlu0 %512, %v42
  %v514 = vpop.permute.xlu0 %513
  %516 = vset.pattern.permute.xlu0 2
  %517 = vperm.xlu0 %516, %v43
  %v518 = vpop.permute.xlu0 %517
  %520 = vset.pattern.permute.xlu0 2
  %521 = vperm.xlu0 %520, %v44
  %v522 = vpop.permute.xlu0 %521
  %524 = vset.pattern.permute.xlu0 2
  %525 = vperm.xlu0 %524, %v45
  %v526 = vpop.permute.xlu0 %525
  %528 = vset.pattern.permute.xlu0 2
  %529 = vperm.xlu0 %528, %v46
  %v530 = vpop.permute.xlu0 %529
  %532 = vset.pattern.permute.xlu0 2
  %533 = vperm.xlu0 %532, %v47
  %v534 = vpop.permute.xlu0 %533
  %536 = vset.pattern.permute.xlu0 2
  %537 = vperm.xlu0 %536, %v48
  %v538 = vpop.permute.xlu0 %537
  %540 = vset.pattern.permute.xlu0 2
  %541 = vperm.xlu0 %540, %v49
  %v542 = vpop.permute.xlu0 %541
  %544 = vset.pattern.permute.xlu0 2
  %545 = vperm.xlu0 %544, %v50
  %v546 = vpop.permute.xlu0 %545
  %548 = vset.pattern.permute.xlu0 2
  %549 = vperm.xlu0 %548, %v51
  %v550 = vpop.permute.xlu0 %549
  %552 = vset.pattern.permute.xlu0 2
  %553 = vperm.xlu0 %552, %v52
  %v554 = vpop.permute.xlu0 %553
  %556 = vset.pattern.permute.xlu0 2
  %557 = vperm.xlu0 %556, %v53
  %v558 = vpop.permute.xlu0 %557
  %560 = vset.pattern.permute.xlu0 2
  %561 = vperm.xlu0 %560, %v54
  %v562 = vpop.permute.xlu0 %561
  %564 = vset.pattern.permute.xlu0 2
  %565 = vperm.xlu0 %564, %v55
  %v566 = vpop.permute.xlu0 %565
  %568 = vset.pattern.permute.xlu0 2
  %569 = vperm.xlu0 %568, %v56
  %v570 = vpop.permute.xlu0 %569
  %572 = vset.pattern.permute.xlu0 2
  %573 = vperm.xlu0 %572, %v57
  %v574 = vpop.permute.xlu0 %573
  %576 = vset.pattern.permute.xlu0 2
  %577 = vperm.xlu0 %576, %v58
  %v578 = vpop.permute.xlu0 %577
  %v580 = vlaneseq
  %v581 = vshrl.u32 %v580, 7
  %v582 = vsub.s32 2, %v581
  %v583 = vrot.slane %v59, %v582
  %v584 = vmul.f32 %v454, %v583
  %v585 = vmul.f32 %v458, %v583
  %v586 = vmul.f32 %v462, %v583
  %v587 = vmul.f32 %v466, %v583
  %v588 = vmul.f32 %v470, %v583
  %v589 = vmul.f32 %v474, %v583
  %v590 = vmul.f32 %v478, %v583
  %v591 = vmul.f32 %v482, %v583
  %v592 = vmul.f32 %v486, %v583
  %v593 = vmul.f32 %v490, %v583
  %v594 = vmul.f32 %v494, %v583
  %v595 = vmul.f32 %v498, %v583
  %v596 = vmul.f32 %v502, %v583
  %v597 = vmul.f32 %v506, %v583
  %v598 = vmul.f32 %v510, %v583
  %v599 = vmul.f32 %v514, %v583
  %v600 = vmul.f32 %v518, %v583
  %v601 = vmul.f32 %v522, %v583
  %v602 = vmul.f32 %v526, %v583
  %v603 = vmul.f32 %v530, %v583
  %v604 = vmul.f32 %v534, %v583
  %v605 = vmul.f32 %v538, %v583
  %v606 = vmul.f32 %v542, %v583
  %v607 = vmul.f32 %v546, %v583
  %v608 = vmul.f32 %v550, %v583
  %v609 = vmul.f32 %v554, %v583
  %v610 = vmul.f32 %v558, %v583
  %v611 = vmul.f32 %v562, %v583
  %v612 = vmul.f32 %v566, %v583
  %v613 = vmul.f32 %v570, %v583
  %v614 = vmul.f32 %v574, %v583
  %v615 = vmul.f32 %v578, %v583
  %v616 = vadd.f32 %v420, %v584
  %v617 = vadd.f32 %v421, %v585
  %v618 = vadd.f32 %v422, %v586
  %v619 = vadd.f32 %v423, %v587
  %v620 = vadd.f32 %v424, %v588
  %v621 = vadd.f32 %v425, %v589
  %v622 = vadd.f32 %v426, %v590
  %v623 = vadd.f32 %v427, %v591
  %v624 = vadd.f32 %v428, %v592
  %v625 = vadd.f32 %v429, %v593
  %v626 = vadd.f32 %v430, %v594
  %v627 = vadd.f32 %v431, %v595
  %v628 = vadd.f32 %v432, %v596
  %v629 = vadd.f32 %v433, %v597
  %v630 = vadd.f32 %v434, %v598
  %v631 = vadd.f32 %v435, %v599
  %v632 = vadd.f32 %v436, %v600
  %v633 = vadd.f32 %v437, %v601
  %v634 = vadd.f32 %v438, %v602
  %v635 = vadd.f32 %v439, %v603
  %v636 = vadd.f32 %v440, %v604
  %v637 = vadd.f32 %v441, %v605
  %v638 = vadd.f32 %v442, %v606
  %v639 = vadd.f32 %v443, %v607
  %v640 = vadd.f32 %v444, %v608
  %v641 = vadd.f32 %v445, %v609
  %v642 = vadd.f32 %v446, %v610
  %v643 = vadd.f32 %v447, %v611
  %v644 = vadd.f32 %v448, %v612
  %v645 = vadd.f32 %v449, %v613
  %v646 = vadd.f32 %v450, %v614
  %v647 = vadd.f32 %v451, %v615
  %648 = vset.pattern.permute.xlu0 3
  %649 = vperm.xlu0 %648, %v27
  %v650 = vpop.permute.xlu0 %649
  %652 = vset.pattern.permute.xlu0 3
  %653 = vperm.xlu0 %652, %v28
  %v654 = vpop.permute.xlu0 %653
  %656 = vset.pattern.permute.xlu0 3
  %657 = vperm.xlu0 %656, %v29
  %v658 = vpop.permute.xlu0 %657
  %660 = vset.pattern.permute.xlu0 3
  %661 = vperm.xlu0 %660, %v30
  %v662 = vpop.permute.xlu0 %661
  %664 = vset.pattern.permute.xlu0 3
  %665 = vperm.xlu0 %664, %v31
  %v666 = vpop.permute.xlu0 %665
  %668 = vset.pattern.permute.xlu0 3
  %669 = vperm.xlu0 %668, %v32
  %v670 = vpop.permute.xlu0 %669
  %672 = vset.pattern.permute.xlu0 3
  %673 = vperm.xlu0 %672, %v33
  %v674 = vpop.permute.xlu0 %673
  %676 = vset.pattern.permute.xlu0 3
  %677 = vperm.xlu0 %676, %v34
  %v678 = vpop.permute.xlu0 %677
  %680 = vset.pattern.permute.xlu0 3
  %681 = vperm.xlu0 %680, %v35
  %v682 = vpop.permute.xlu0 %681
  %684 = vset.pattern.permute.xlu0 3
  %685 = vperm.xlu0 %684, %v36
  %v686 = vpop.permute.xlu0 %685
  %688 = vset.pattern.permute.xlu0 3
  %689 = vperm.xlu0 %688, %v37
  %v690 = vpop.permute.xlu0 %689
  %692 = vset.pattern.permute.xlu0 3
  %693 = vperm.xlu0 %692, %v38
  %v694 = vpop.permute.xlu0 %693
  %696 = vset.pattern.permute.xlu0 3
  %697 = vperm.xlu0 %696, %v39
  %v698 = vpop.permute.xlu0 %697
  %700 = vset.pattern.permute.xlu0 3
  %701 = vperm.xlu0 %700, %v40
  %v702 = vpop.permute.xlu0 %701
  %704 = vset.pattern.permute.xlu0 3
  %705 = vperm.xlu0 %704, %v41
  %v706 = vpop.permute.xlu0 %705
  %708 = vset.pattern.permute.xlu0 3
  %709 = vperm.xlu0 %708, %v42
  %v710 = vpop.permute.xlu0 %709
  %712 = vset.pattern.permute.xlu0 3
  %713 = vperm.xlu0 %712, %v43
  %v714 = vpop.permute.xlu0 %713
  %716 = vset.pattern.permute.xlu0 3
  %717 = vperm.xlu0 %716, %v44
  %v718 = vpop.permute.xlu0 %717
  %720 = vset.pattern.permute.xlu0 3
  %721 = vperm.xlu0 %720, %v45
  %v722 = vpop.permute.xlu0 %721
  %724 = vset.pattern.permute.xlu0 3
  %725 = vperm.xlu0 %724, %v46
  %v726 = vpop.permute.xlu0 %725
  %728 = vset.pattern.permute.xlu0 3
  %729 = vperm.xlu0 %728, %v47
  %v730 = vpop.permute.xlu0 %729
  %732 = vset.pattern.permute.xlu0 3
  %733 = vperm.xlu0 %732, %v48
  %v734 = vpop.permute.xlu0 %733
  %736 = vset.pattern.permute.xlu0 3
  %737 = vperm.xlu0 %736, %v49
  %v738 = vpop.permute.xlu0 %737
  %740 = vset.pattern.permute.xlu0 3
  %741 = vperm.xlu0 %740, %v50
  %v742 = vpop.permute.xlu0 %741
  %744 = vset.pattern.permute.xlu0 3
  %745 = vperm.xlu0 %744, %v51
  %v746 = vpop.permute.xlu0 %745
  %748 = vset.pattern.permute.xlu0 3
  %749 = vperm.xlu0 %748, %v52
  %v750 = vpop.permute.xlu0 %749
  %752 = vset.pattern.permute.xlu0 3
  %753 = vperm.xlu0 %752, %v53
  %v754 = vpop.permute.xlu0 %753
  %756 = vset.pattern.permute.xlu0 3
  %757 = vperm.xlu0 %756, %v54
  %v758 = vpop.permute.xlu0 %757
  %760 = vset.pattern.permute.xlu0 3
  %761 = vperm.xlu0 %760, %v55
  %v762 = vpop.permute.xlu0 %761
  %764 = vset.pattern.permute.xlu0 3
  %765 = vperm.xlu0 %764, %v56
  %v766 = vpop.permute.xlu0 %765
  %768 = vset.pattern.permute.xlu0 3
  %769 = vperm.xlu0 %768, %v57
  %v770 = vpop.permute.xlu0 %769
  %772 = vset.pattern.permute.xlu0 3
  %773 = vperm.xlu0 %772, %v58
  %v774 = vpop.permute.xlu0 %773
  %v776 = vlaneseq
  %v777 = vshrl.u32 %v776, 7
  %v778 = vsub.s32 3, %v777
  %v779 = vrot.slane %v59, %v778
  %v780 = vmul.f32 %v650, %v779
  %v781 = vmul.f32 %v654, %v779
  %v782 = vmul.f32 %v658, %v779
  %v783 = vmul.f32 %v662, %v779
  %v784 = vmul.f32 %v666, %v779
  %v785 = vmul.f32 %v670, %v779
  %v786 = vmul.f32 %v674, %v779
  %v787 = vmul.f32 %v678, %v779
  %v788 = vmul.f32 %v682, %v779
  %v789 = vmul.f32 %v686, %v779
  %v790 = vmul.f32 %v690, %v779
  %v791 = vmul.f32 %v694, %v779
  %v792 = vmul.f32 %v698, %v779
  %v793 = vmul.f32 %v702, %v779
  %v794 = vmul.f32 %v706, %v779
  %v795 = vmul.f32 %v710, %v779
  %v796 = vmul.f32 %v714, %v779
  %v797 = vmul.f32 %v718, %v779
  %v798 = vmul.f32 %v722, %v779
  %v799 = vmul.f32 %v726, %v779
  %v800 = vmul.f32 %v730, %v779
  %v801 = vmul.f32 %v734, %v779
  %v802 = vmul.f32 %v738, %v779
  %v803 = vmul.f32 %v742, %v779
  %v804 = vmul.f32 %v746, %v779
  %v805 = vmul.f32 %v750, %v779
  %v806 = vmul.f32 %v754, %v779
  %v807 = vmul.f32 %v758, %v779
  %v808 = vmul.f32 %v762, %v779
  %v809 = vmul.f32 %v766, %v779
  %v810 = vmul.f32 %v770, %v779
  %v811 = vmul.f32 %v774, %v779
  %v812 = vadd.f32 %v616, %v780
  %v813 = vadd.f32 %v617, %v781
  %v814 = vadd.f32 %v618, %v782
  %v815 = vadd.f32 %v619, %v783
  %v816 = vadd.f32 %v620, %v784
  %v817 = vadd.f32 %v621, %v785
  %v818 = vadd.f32 %v622, %v786
  %v819 = vadd.f32 %v623, %v787
  %v820 = vadd.f32 %v624, %v788
  %v821 = vadd.f32 %v625, %v789
  %v822 = vadd.f32 %v626, %v790
  %v823 = vadd.f32 %v627, %v791
  %v824 = vadd.f32 %v628, %v792
  %v825 = vadd.f32 %v629, %v793
  %v826 = vadd.f32 %v630, %v794
  %v827 = vadd.f32 %v631, %v795
  %v828 = vadd.f32 %v632, %v796
  %v829 = vadd.f32 %v633, %v797
  %v830 = vadd.f32 %v634, %v798
  %v831 = vadd.f32 %v635, %v799
  %v832 = vadd.f32 %v636, %v800
  %v833 = vadd.f32 %v637, %v801
  %v834 = vadd.f32 %v638, %v802
  %v835 = vadd.f32 %v639, %v803
  %v836 = vadd.f32 %v640, %v804
  %v837 = vadd.f32 %v641, %v805
  %v838 = vadd.f32 %v642, %v806
  %v839 = vadd.f32 %v643, %v807
  %v840 = vadd.f32 %v644, %v808
  %v841 = vadd.f32 %v645, %v809
  %v842 = vadd.f32 %v646, %v810
  %v843 = vadd.f32 %v647, %v811
  %v844 = vld [vmem:[%s2] sm:$0x1]
  %v846 = vlaneseq
  %v847 = vshrl.u32 %v846, 7
  %v848 = vsub.s32 0, %v847
  %v849 = vrot.slane %v844, %v848
  %v851 = vadd.f32 %v812, %v849
  %v852 = vadd.f32 %v813, %v849
  %v853 = vadd.f32 %v814, %v849
  %v854 = vadd.f32 %v815, %v849
  %v855 = vadd.f32 %v816, %v849
  %v856 = vadd.f32 %v817, %v849
  %v857 = vadd.f32 %v818, %v849
  %v858 = vadd.f32 %v819, %v849
  %v859 = vadd.f32 %v820, %v849
  %v860 = vadd.f32 %v821, %v849
  %v861 = vadd.f32 %v822, %v849
  %v862 = vadd.f32 %v823, %v849
  %v863 = vadd.f32 %v824, %v849
  %v864 = vadd.f32 %v825, %v849
  %v865 = vadd.f32 %v826, %v849
  %v866 = vadd.f32 %v827, %v849
  %v867 = vadd.f32 %v828, %v849
  %v868 = vadd.f32 %v829, %v849
  %v869 = vadd.f32 %v830, %v849
  %v870 = vadd.f32 %v831, %v849
  %v871 = vadd.f32 %v832, %v849
  %v872 = vadd.f32 %v833, %v849
  %v873 = vadd.f32 %v834, %v849
  %v874 = vadd.f32 %v835, %v849
  %v875 = vadd.f32 %v836, %v849
  %v876 = vadd.f32 %v837, %v849
  %v877 = vadd.f32 %v838, %v849
  %v878 = vadd.f32 %v839, %v849
  %v879 = vadd.f32 %v840, %v849
  %v880 = vadd.f32 %v841, %v849
  %v881 = vadd.f32 %v842, %v849
  %v882 = vadd.f32 %v843, %v849
  %v883 = vmax.f32 %v851, 0.0
  %v884 = vmax.f32 %v852, 0.0
  %v885 = vmax.f32 %v853, 0.0
  %v886 = vmax.f32 %v854, 0.0
  %v887 = vmax.f32 %v855, 0.0
  %v888 = vmax.f32 %v856, 0.0
  %v889 = vmax.f32 %v857, 0.0
  %v890 = vmax.f32 %v858, 0.0
  %v891 = vmax.f32 %v859, 0.0
  %v892 = vmax.f32 %v860, 0.0
  %v893 = vmax.f32 %v861, 0.0
  %v894 = vmax.f32 %v862, 0.0
  %v895 = vmax.f32 %v863, 0.0
  %v896 = vmax.f32 %v864, 0.0
  %v897 = vmax.f32 %v865, 0.0
  %v898 = vmax.f32 %v866, 0.0
  %v899 = vmax.f32 %v867, 0.0
  %v900 = vmax.f32 %v868, 0.0
  %v901 = vmax.f32 %v869, 0.0
  %v902 = vmax.f32 %v870, 0.0
  %v903 = vmax.f32 %v871, 0.0
  %v904 = vmax.f32 %v872, 0.0
  %v905 = vmax.f32 %v873, 0.0
  %v906 = vmax.f32 %v874, 0.0
  %v907 = vmax.f32 %v875, 0.0
  %v908 = vmax.f32 %v876, 0.0
  %v909 = vmax.f32 %v877, 0.0
  %v910 = vmax.f32 %v878, 0.0
  %v911 = vmax.f32 %v879, 0.0
  %v912 = vmax.f32 %v880, 0.0
  %v913 = vmax.f32 %v881, 0.0
  %v914 = vmax.f32 %v882, 0.0
  %v915 = vpack.c.bf16 %v884, %v883
  %v916 = vpack.c.bf16 %v886, %v885
  %v917 = vpack.c.bf16 %v888, %v887
  %v918 = vpack.c.bf16 %v890, %v889
  %v919 = vpack.c.bf16 %v892, %v891
  %v920 = vpack.c.bf16 %v894, %v893
  %v921 = vpack.c.bf16 %v896, %v895
  %v922 = vpack.c.bf16 %v898, %v897
  %v923 = vpack.c.bf16 %v900, %v899
  %v924 = vpack.c.bf16 %v902, %v901
  %v925 = vpack.c.bf16 %v904, %v903
  %v926 = vpack.c.bf16 %v906, %v905
  %v927 = vpack.c.bf16 %v908, %v907
  %v928 = vpack.c.bf16 %v910, %v909
  %v929 = vpack.c.bf16 %v912, %v911
  %v930 = vpack.c.bf16 %v914, %v913
  %v931 = vld [vmem:[%s3] sm:$0xf]
  %v932 = vld [vmem:[%s3 + $0x4] sm:$0xf]
  %v933 = vld [vmem:[%s3 + $0x8] sm:$0xf]
  %v934 = vld [vmem:[%s3 + $0xc] sm:$0xf]
  %v935 = vld [vmem:[%s3 + $0x10] sm:$0xf]
  %v936 = vld [vmem:[%s3 + $0x14] sm:$0xf]
  %v937 = vld [vmem:[%s3 + $0x18] sm:$0xf]
  %v938 = vld [vmem:[%s3 + $0x1c] sm:$0xf]
  %v939 = vld [vmem:[%s4] sm:$0x1]
  %v941 = vlaneseq
  %v942 = vshrl.u32 %v941, 7
  %v943 = vsub.s32 0, %v942
  %v944 = vrot.slane %v939, %v943
  %v954 = vunpack.c.l.b16 %v931
  %v955 = vunpack.c.l.b16 %v932
  %v956 = vunpack.c.l.b16 %v933
  %v957 = vunpack.c.l.b16 %v934
  %v958 = vunpack.c.l.b16 %v935
  %v959 = vunpack.c.l.b16 %v936
  %v960 = vunpack.c.l.b16 %v937
  %v961 = vunpack.c.l.b16 %v938
  %v962 = vpack.c.b16 %v955, %v954
  %v963 = vpack.c.b16 %v957, %v956
  %v964 = vpack.c.b16 %v959, %v958
  %v965 = vpack.c.b16 %v961, %v960
  %vm970 = vcmask 523264
  %v972 = vsel %vm970, %v915, 0
  %v975 = vsel %vm970, %v916, 0
  %v978 = vsel %vm970, %v917, 0
  %v981 = vsel %vm970, %v918, 0
  %v984 = vsel %vm970, %v919, 0
  %v987 = vsel %vm970, %v920, 0
  %v990 = vsel %vm970, %v921, 0
  %v993 = vsel %vm970, %v922, 0
  %v996 = vsel %vm970, %v923, 0
  %v999 = vsel %vm970, %v924, 0
  %v1002 = vsel %vm970, %v925, 0
  %v1005 = vsel %vm970, %v926, 0
  %v1008 = vsel %vm970, %v927, 0
  %v1011 = vsel %vm970, %v928, 0
  %v1014 = vsel %vm970, %v929, 0
  %v1017 = vsel %vm970, %v930, 0
  %1019 = vmatprep.subr.bf16.mxu0 0
  %1020 = vmatpush1.bf16.msra.mxu0 %v962
  %1021 = vmatprep.subr.bf16.mxu0 0
  %1022 = vmatpush1.bf16.msra.mxu0 %v963
  %1023 = vmatprep.subr.bf16.mxu0 0
  %1024 = vmatpush1.bf16.msra.mxu0 %v964
  %1025 = vmatprep.subr.bf16.mxu0 0
  %1026 = vmatpush1.bf16.msra.mxu0 %v965
  %1027 = vmatprep.subr.bf16.mxu0 0
  %1028 = vmatpush1.bf16.msra.mxu0 0
  %1029 = vmatprep.subr.bf16.mxu0 0
  %1030 = vmatpush1.bf16.msra.mxu0 0
  %1031 = vmatprep.subr.bf16.mxu0 0
  %1032 = vmatpush1.bf16.msra.mxu0 0
  %1033 = vmatprep.subr.bf16.mxu0 0
  %1034 = vmatpush1.bf16.msra.mxu0 0
  %1035 = vmatprep.subr.bf16.mxu0 0
  %1036 = vmatpush1.bf16.msra.mxu0 0
  %1037 = vmatprep.subr.bf16.mxu0 0
  %1038 = vmatpush1.bf16.msra.mxu0 0
  %1039 = vmatprep.subr.bf16.mxu0 0
  %1040 = vmatpush1.bf16.msra.mxu0 0
  %1041 = vmatprep.subr.bf16.mxu0 0
  %1042 = vmatpush1.bf16.msra.mxu0 0
  %1043 = vmatprep.subr.bf16.mxu0 0
  %1044 = vmatpush1.bf16.msra.mxu0 0
  %1045 = vmatprep.subr.bf16.mxu0 0
  %1046 = vmatpush1.bf16.msra.mxu0 0
  %1047 = vmatprep.subr.bf16.mxu0 0
  %1048 = vmatpush1.bf16.msra.mxu0 0
  %1049 = vmatprep.subr.bf16.mxu0 0
  %1050 = vmatpush1.bf16.msra.mxu0 0
  %1051 = vmatprep.mubr.bf16.mxu0 0
  %1052 = vmatmul.mubr.bf16.gmra.mrb[0].mxu0 %v972
  %v1053 = vpop.f32.mrb[0].mxu0
  %v1054 = vadd.f32 %v944, %v1053
  %v1055 = vpop.f32.mrb[0].mxu0
  %v1056 = vpop.f32.mrb[0].mxu0
  %v1057 = vadd.f32 %v944, %v1056
  %v1058 = vpop.f32.mrb[0].mxu0
  %1059 = vmatprep.mubr.bf16.mxu0 0
  %1060 = vmatmul.mubr.bf16.gmra.mrb[0].mxu0 %v975
  %v1061 = vpop.f32.mrb[0].mxu0
  %v1062 = vadd.f32 %v944, %v1061
  %v1063 = vpop.f32.mrb[0].mxu0
  %v1064 = vpop.f32.mrb[0].mxu0
  %v1065 = vadd.f32 %v944, %v1064
  %v1066 = vpop.f32.mrb[0].mxu0
  %1067 = vmatprep.mubr.bf16.mxu0 0
  %1068 = vmatmul.mubr.bf16.gmra.mrb[0].mxu0 %v978
  %v1069 = vpop.f32.mrb[0].mxu0
  %v1070 = vadd.f32 %v944, %v1069
  %v1071 = vpop.f32.mrb[0].mxu0
  %v1072 = vpop.f32.mrb[0].mxu0
  %v1073 = vadd.f32 %v944, %v1072
  %v1074 = vpop.f32.mrb[0].mxu0
  %1075 = vmatprep.mubr.bf16.mxu0 0
  %1076 = vmatmul.mubr.bf16.gmra.mrb[0].mxu0 %v981
  %v1077 = vpop.f32.mrb[0].mxu0
  %v1078 = vadd.f32 %v944, %v1077
  %v1079 = vpop.f32.mrb[0].mxu0
  %v1080 = vpop.f32.mrb[0].mxu0
  %v1081 = vadd.f32 %v944, %v1080
  %v1082 = vpop.f32.mrb[0].mxu0
  %1083 = vmatprep.mubr.bf16.mxu0 0
  %1084 = vmatmul.mubr.bf16.gmra.mrb[0].mxu0 %v984
  %v1085 = vpop.f32.mrb[0].mxu0
  %v1086 = vadd.f32 %v944, %v1085
  %v1087 = vpop.f32.mrb[0].mxu0
  %v1088 = vpop.f32.mrb[0].mxu0
  %v1089 = vadd.f32 %v944, %v1088
  %v1090 = vpop.f32.mrb[0].mxu0
  %1091 = vmatprep.mubr.bf16.mxu0 0
  %1092 = vmatmul.mubr.bf16.gmra.mrb[0].mxu0 %v987
  %v1093 = vpop.f32.mrb[0].mxu0
  %v1094 = vadd.f32 %v944, %v1093
  %v1095 = vpop.f32.mrb[0].mxu0
  %v1096 = vpop.f32.mrb[0].mxu0
  %v1097 = vadd.f32 %v944, %v1096
  %v1098 = vpop.f32.mrb[0].mxu0
  %1099 = vmatprep.mubr.bf16.mxu0 0
  %1100 = vmatmul.mubr.bf16.gmra.mrb[0].mxu0 %v990
  %v1101 = vpop.f32.mrb[0].mxu0
  %v1102 = vadd.f32 %v944, %v1101
  %v1103 = vpop.f32.mrb[0].mxu0
  %v1104 = vpop.f32.mrb[0].mxu0
  %v1105 = vadd.f32 %v944, %v1104
  %v1106 = vpop.f32.mrb[0].mxu0
  %1107 = vmatprep.mubr.bf16.mxu0 0
  %1108 = vmatmul.mubr.bf16.gmra.mrb[0].mxu0 %v993
  %v1109 = vpop.f32.mrb[0].mxu0
  %v1110 = vadd.f32 %v944, %v1109
  %v1111 = vpop.f32.mrb[0].mxu0
  %v1112 = vpop.f32.mrb[0].mxu0
  %v1113 = vadd.f32 %v944, %v1112
  %v1114 = vpop.f32.mrb[0].mxu0
  %1115 = vmatprep.mubr.bf16.mxu0 0
  %1116 = vmatmul.mubr.bf16.gmra.mrb[0].mxu0 %v996
  %v1117 = vpop.f32.mrb[0].mxu0
  %v1118 = vadd.f32 %v944, %v1117
  %v1119 = vpop.f32.mrb[0].mxu0
  %v1120 = vpop.f32.mrb[0].mxu0
  %v1121 = vadd.f32 %v944, %v1120
  %v1122 = vpop.f32.mrb[0].mxu0
  %1123 = vmatprep.mubr.bf16.mxu0 0
  %1124 = vmatmul.mubr.bf16.gmra.mrb[0].mxu0 %v999
  %v1125 = vpop.f32.mrb[0].mxu0
  %v1126 = vadd.f32 %v944, %v1125
  %v1127 = vpop.f32.mrb[0].mxu0
  %v1128 = vpop.f32.mrb[0].mxu0
  %v1129 = vadd.f32 %v944, %v1128
  %v1130 = vpop.f32.mrb[0].mxu0
  %1131 = vmatprep.mubr.bf16.mxu0 0
  %1132 = vmatmul.mubr.bf16.gmra.mrb[0].mxu0 %v1002
  %v1133 = vpop.f32.mrb[0].mxu0
  %v1134 = vadd.f32 %v944, %v1133
  %v1135 = vpop.f32.mrb[0].mxu0
  %v1136 = vpop.f32.mrb[0].mxu0
  %v1137 = vadd.f32 %v944, %v1136
  %v1138 = vpop.f32.mrb[0].mxu0
  %1139 = vmatprep.mubr.bf16.mxu0 0
  %1140 = vmatmul.mubr.bf16.gmra.mrb[0].mxu0 %v1005
  %v1141 = vpop.f32.mrb[0].mxu0
  %v1142 = vadd.f32 %v944, %v1141
  %v1143 = vpop.f32.mrb[0].mxu0
  %v1144 = vpop.f32.mrb[0].mxu0
  %v1145 = vadd.f32 %v944, %v1144
  %v1146 = vpop.f32.mrb[0].mxu0
  %1147 = vmatprep.mubr.bf16.mxu0 0
  %1148 = vmatmul.mubr.bf16.gmra.mrb[0].mxu0 %v1008
  %v1149 = vpop.f32.mrb[0].mxu0
  %v1150 = vadd.f32 %v944, %v1149
  %v1151 = vpop.f32.mrb[0].mxu0
  %v1152 = vpop.f32.mrb[0].mxu0
  %v1153 = vadd.f32 %v944, %v1152
  %v1154 = vpop.f32.mrb[0].mxu0
  %1155 = vmatprep.mubr.bf16.mxu0 0
  %1156 = vmatmul.mubr.bf16.gmra.mrb[0].mxu0 %v1011
  %v1157 = vpop.f32.mrb[0].mxu0
  %v1158 = vadd.f32 %v944, %v1157
  %v1159 = vpop.f32.mrb[0].mxu0
  %v1160 = vpop.f32.mrb[0].mxu0
  %v1161 = vadd.f32 %v944, %v1160
  %v1162 = vpop.f32.mrb[0].mxu0
  %1163 = vmatprep.mubr.bf16.mxu0 0
  %1164 = vmatmul.mubr.bf16.gmra.mrb[0].mxu0 %v1014
  %v1165 = vpop.f32.mrb[0].mxu0
  %v1166 = vadd.f32 %v944, %v1165
  %v1167 = vpop.f32.mrb[0].mxu0
  %v1168 = vpop.f32.mrb[0].mxu0
  %v1169 = vadd.f32 %v944, %v1168
  %v1170 = vpop.f32.mrb[0].mxu0
  %1171 = vmatprep.mubr.bf16.mxu0 0
  %1172 = vmatmul.mubr.bf16.gmra.mrb[0].mxu0 %v1017
  %v1173 = vpop.f32.mrb[0].mxu0
  %v1174 = vadd.f32 %v944, %v1173
  %v1175 = vpop.f32.mrb[0].mxu0
  %v1176 = vpop.f32.mrb[0].mxu0
  %v1177 = vadd.f32 %v944, %v1176
  %v1178 = vpop.f32.mrb[0].mxu0
  %1179 = vdwg.mxu0
  %v1180 = vmax.f32 %v1054, 0.0
  %v1181 = vmax.f32 %v1057, 0.0
  %v1182 = vmax.f32 %v1062, 0.0
  %v1183 = vmax.f32 %v1065, 0.0
  %v1184 = vmax.f32 %v1070, 0.0
  %v1185 = vmax.f32 %v1073, 0.0
  %v1186 = vmax.f32 %v1078, 0.0
  %v1187 = vmax.f32 %v1081, 0.0
  %v1188 = vmax.f32 %v1086, 0.0
  %v1189 = vmax.f32 %v1089, 0.0
  %v1190 = vmax.f32 %v1094, 0.0
  %v1191 = vmax.f32 %v1097, 0.0
  %v1192 = vmax.f32 %v1102, 0.0
  %v1193 = vmax.f32 %v1105, 0.0
  %v1194 = vmax.f32 %v1110, 0.0
  %v1195 = vmax.f32 %v1113, 0.0
  %v1196 = vmax.f32 %v1118, 0.0
  %v1197 = vmax.f32 %v1121, 0.0
  %v1198 = vmax.f32 %v1126, 0.0
  %v1199 = vmax.f32 %v1129, 0.0
  %v1200 = vmax.f32 %v1134, 0.0
  %v1201 = vmax.f32 %v1137, 0.0
  %v1202 = vmax.f32 %v1142, 0.0
  %v1203 = vmax.f32 %v1145, 0.0
  %v1204 = vmax.f32 %v1150, 0.0
  %v1205 = vmax.f32 %v1153, 0.0
  %v1206 = vmax.f32 %v1158, 0.0
  %v1207 = vmax.f32 %v1161, 0.0
  %v1208 = vmax.f32 %v1166, 0.0
  %v1209 = vmax.f32 %v1169, 0.0
  %v1210 = vmax.f32 %v1174, 0.0
  %v1211 = vmax.f32 %v1177, 0.0
  %v1212 = vpack.c.bf16 %v1181, %v1180
  %v1213 = vpack.c.bf16 %v1183, %v1182
  %v1214 = vpack.c.bf16 %v1185, %v1184
  %v1215 = vpack.c.bf16 %v1187, %v1186
  %v1216 = vpack.c.bf16 %v1189, %v1188
  %v1217 = vpack.c.bf16 %v1191, %v1190
  %v1218 = vpack.c.bf16 %v1193, %v1192
  %v1219 = vpack.c.bf16 %v1195, %v1194
  %v1220 = vpack.c.bf16 %v1197, %v1196
  %v1221 = vpack.c.bf16 %v1199, %v1198
  %v1222 = vpack.c.bf16 %v1201, %v1200
  %v1223 = vpack.c.bf16 %v1203, %v1202
  %v1224 = vpack.c.bf16 %v1205, %v1204
  %v1225 = vpack.c.bf16 %v1207, %v1206
  %v1226 = vpack.c.bf16 %v1209, %v1208
  %v1227 = vpack.c.bf16 %v1211, %v1210
  %v1228 = vld [vmem:[%s5] sm:$0xf]
  %v1229 = vld [vmem:[%s5 + $0x4] sm:$0xf]
  %v1230 = vld [vmem:[%s5 + $0x8] sm:$0xf]
  %v1231 = vld [vmem:[%s5 + $0xc] sm:$0xf]
  %v1232 = vld [vmem:[%s5 + $0x10] sm:$0xf]
  %v1233 = vld [vmem:[%s5 + $0x14] sm:$0xf]
  %v1234 = vld [vmem:[%s5 + $0x18] sm:$0xf]
  %v1235 = vld [vmem:[%s5 + $0x1c] sm:$0xf]
  %v1236 = vld [vmem:[%s5 + $0x20] sm:$0xf]
  %v1237 = vld [vmem:[%s5 + $0x24] sm:$0xf]
  %v1238 = vld [vmem:[%s5 + $0x28] sm:$0xf]
  %v1239 = vld [vmem:[%s5 + $0x2c] sm:$0xf]
  %v1240 = vld [vmem:[%s5 + $0x30] sm:$0xf]
  %v1241 = vld [vmem:[%s5 + $0x34] sm:$0xf]
  %v1242 = vld [vmem:[%s5 + $0x38] sm:$0xf]
  %v1243 = vld [vmem:[%s5 + $0x3c] sm:$0xf]
  %v1244 = vld [vmem:[%s6] sm:$0x1]
  %v1246 = vlaneseq
  %v1247 = vshrl.u32 %v1246, 7
  %v1248 = vsub.s32 0, %v1247
  %v1249 = vrot.slane %v1244, %v1248
  %v1267 = vunpack.c.l.b16 %v1228
  %v1268 = vunpack.c.l.b16 %v1229
  %v1269 = vunpack.c.l.b16 %v1230
  %v1270 = vunpack.c.l.b16 %v1231
  %v1271 = vunpack.c.l.b16 %v1232
  %v1272 = vunpack.c.l.b16 %v1233
  %v1273 = vunpack.c.l.b16 %v1234
  %v1274 = vunpack.c.l.b16 %v1235
  %v1275 = vunpack.c.l.b16 %v1236
  %v1276 = vunpack.c.l.b16 %v1237
  %v1277 = vunpack.c.l.b16 %v1238
  %v1278 = vunpack.c.l.b16 %v1239
  %v1279 = vunpack.c.l.b16 %v1240
  %v1280 = vunpack.c.l.b16 %v1241
  %v1281 = vunpack.c.l.b16 %v1242
  %v1282 = vunpack.c.l.b16 %v1243
  %v1283 = vpack.c.b16 %v1268, %v1267
  %v1284 = vpack.c.b16 %v1270, %v1269
  %v1285 = vpack.c.b16 %v1272, %v1271
  %v1286 = vpack.c.b16 %v1274, %v1273
  %v1287 = vpack.c.b16 %v1276, %v1275
  %v1288 = vpack.c.b16 %v1278, %v1277
  %v1289 = vpack.c.b16 %v1280, %v1279
  %v1290 = vpack.c.b16 %v1282, %v1281
  %1299 = vmatprep.subr.bf16.mxu0 0
  %1300 = vmatpush1.bf16.msra.mxu0 %v1283
  %1301 = vmatprep.subr.bf16.mxu0 0
  %1302 = vmatpush1.bf16.msra.mxu0 %v1284
  %1303 = vmatprep.subr.bf16.mxu0 0
  %1304 = vmatpush1.bf16.msra.mxu0 %v1285
  %1305 = vmatprep.subr.bf16.mxu0 0
  %1306 = vmatpush1.bf16.msra.mxu0 %v1286
  %1307 = vmatprep.subr.bf16.mxu0 0
  %1308 = vmatpush1.bf16.msra.mxu0 %v1287
  %1309 = vmatprep.subr.bf16.mxu0 0
  %1310 = vmatpush1.bf16.msra.mxu0 %v1288
  %1311 = vmatprep.subr.bf16.mxu0 0
  %1312 = vmatpush1.bf16.msra.mxu0 %v1289
  %1313 = vmatprep.subr.bf16.mxu0 0
  %1314 = vmatpush1.bf16.msra.mxu0 %v1290
  %1315 = vmatprep.subr.bf16.mxu0 0
  %1316 = vmatpush1.bf16.msra.mxu0 0
  %1317 = vmatprep.subr.bf16.mxu0 0
  %1318 = vmatpush1.bf16.msra.mxu0 0
  %1319 = vmatprep.subr.bf16.mxu0 0
  %1320 = vmatpush1.bf16.msra.mxu0 0
  %1321 = vmatprep.subr.bf16.mxu0 0
  %1322 = vmatpush1.bf16.msra.mxu0 0
  %1323 = vmatprep.subr.bf16.mxu0 0
  %1324 = vmatpush1.bf16.msra.mxu0 0
  %1325 = vmatprep.subr.bf16.mxu0 0
  %1326 = vmatpush1.bf16.msra.mxu0 0
  %1327 = vmatprep.subr.bf16.mxu0 0
  %1328 = vmatpush1.bf16.msra.mxu0 0
  %1329 = vmatprep.subr.bf16.mxu0 0
  %1330 = vmatpush1.bf16.msra.mxu0 0
  %1331 = vmatprep.mubr.bf16.mxu0 0
  %1332 = vmatmul.mubr.bf16.gmra.mrb[0].mxu0 %v1212
  %v1333 = vpop.f32.mrb[0].mxu0
  %v1334 = vadd.f32 %v1249, %v1333
  %v1335 = vpop.f32.mrb[0].mxu0
  %v1336 = vpop.f32.mrb[0].mxu0
  %v1337 = vadd.f32 %v1249, %v1336
  %v1338 = vpop.f32.mrb[0].mxu0
  %1339 = vmatprep.mubr.bf16.mxu0 0
  %1340 = vmatmul.mubr.bf16.gmra.mrb[0].mxu0 %v1213
  %v1341 = vpop.f32.mrb[0].mxu0
  %v1342 = vadd.f32 %v1249, %v1341
  %v1343 = vpop.f32.mrb[0].mxu0
  %v1344 = vpop.f32.mrb[0].mxu0
  %v1345 = vadd.f32 %v1249, %v1344
  %v1346 = vpop.f32.mrb[0].mxu0
  %1347 = vmatprep.mubr.bf16.mxu0 0
  %1348 = vmatmul.mubr.bf16.gmra.mrb[0].mxu0 %v1214
  %v1349 = vpop.f32.mrb[0].mxu0
  %v1350 = vadd.f32 %v1249, %v1349
  %v1351 = vpop.f32.mrb[0].mxu0
  %v1352 = vpop.f32.mrb[0].mxu0
  %v1353 = vadd.f32 %v1249, %v1352
  %v1354 = vpop.f32.mrb[0].mxu0
  %1355 = vmatprep.mubr.bf16.mxu0 0
  %1356 = vmatmul.mubr.bf16.gmra.mrb[0].mxu0 %v1215
  %v1357 = vpop.f32.mrb[0].mxu0
  %v1358 = vadd.f32 %v1249, %v1357
  %v1359 = vpop.f32.mrb[0].mxu0
  %v1360 = vpop.f32.mrb[0].mxu0
  %v1361 = vadd.f32 %v1249, %v1360
  %v1362 = vpop.f32.mrb[0].mxu0
  %1363 = vmatprep.mubr.bf16.mxu0 0
  %1364 = vmatmul.mubr.bf16.gmra.mrb[0].mxu0 %v1216
  %v1365 = vpop.f32.mrb[0].mxu0
  %v1366 = vadd.f32 %v1249, %v1365
  %v1367 = vpop.f32.mrb[0].mxu0
  %v1368 = vpop.f32.mrb[0].mxu0
  %v1369 = vadd.f32 %v1249, %v1368
  %v1370 = vpop.f32.mrb[0].mxu0
  %1371 = vmatprep.mubr.bf16.mxu0 0
  %1372 = vmatmul.mubr.bf16.gmra.mrb[0].mxu0 %v1217
  %v1373 = vpop.f32.mrb[0].mxu0
  %v1374 = vadd.f32 %v1249, %v1373
  %v1375 = vpop.f32.mrb[0].mxu0
  %v1376 = vpop.f32.mrb[0].mxu0
  %v1377 = vadd.f32 %v1249, %v1376
  %v1378 = vpop.f32.mrb[0].mxu0
  %1379 = vmatprep.mubr.bf16.mxu0 0
  %1380 = vmatmul.mubr.bf16.gmra.mrb[0].mxu0 %v1218
  %v1381 = vpop.f32.mrb[0].mxu0
  %v1382 = vadd.f32 %v1249, %v1381
  %v1383 = vpop.f32.mrb[0].mxu0
  %v1384 = vpop.f32.mrb[0].mxu0
  %v1385 = vadd.f32 %v1249, %v1384
  %v1386 = vpop.f32.mrb[0].mxu0
  %1387 = vmatprep.mubr.bf16.mxu0 0
  %1388 = vmatmul.mubr.bf16.gmra.mrb[0].mxu0 %v1219
  %v1389 = vpop.f32.mrb[0].mxu0
  %v1390 = vadd.f32 %v1249, %v1389
  %v1391 = vpop.f32.mrb[0].mxu0
  %v1392 = vpop.f32.mrb[0].mxu0
  %v1393 = vadd.f32 %v1249, %v1392
  %v1394 = vpop.f32.mrb[0].mxu0
  %1395 = vmatprep.mubr.bf16.mxu0 0
  %1396 = vmatmul.mubr.bf16.gmra.mrb[0].mxu0 %v1220
  %v1397 = vpop.f32.mrb[0].mxu0
  %v1398 = vadd.f32 %v1249, %v1397
  %v1399 = vpop.f32.mrb[0].mxu0
  %v1400 = vpop.f32.mrb[0].mxu0
  %v1401 = vadd.f32 %v1249, %v1400
  %v1402 = vpop.f32.mrb[0].mxu0
  %1403 = vmatprep.mubr.bf16.mxu0 0
  %1404 = vmatmul.mubr.bf16.gmra.mrb[0].mxu0 %v1221
  %v1405 = vpop.f32.mrb[0].mxu0
  %v1406 = vadd.f32 %v1249, %v1405
  %v1407 = vpop.f32.mrb[0].mxu0
  %v1408 = vpop.f32.mrb[0].mxu0
  %v1409 = vadd.f32 %v1249, %v1408
  %v1410 = vpop.f32.mrb[0].mxu0
  %1411 = vmatprep.mubr.bf16.mxu0 0
  %1412 = vmatmul.mubr.bf16.gmra.mrb[0].mxu0 %v1222
  %v1413 = vpop.f32.mrb[0].mxu0
  %v1414 = vadd.f32 %v1249, %v1413
  %v1415 = vpop.f32.mrb[0].mxu0
  %v1416 = vpop.f32.mrb[0].mxu0
  %v1417 = vadd.f32 %v1249, %v1416
  %v1418 = vpop.f32.mrb[0].mxu0
  %1419 = vmatprep.mubr.bf16.mxu0 0
  %1420 = vmatmul.mubr.bf16.gmra.mrb[0].mxu0 %v1223
  %v1421 = vpop.f32.mrb[0].mxu0
  %v1422 = vadd.f32 %v1249, %v1421
  %v1423 = vpop.f32.mrb[0].mxu0
  %v1424 = vpop.f32.mrb[0].mxu0
  %v1425 = vadd.f32 %v1249, %v1424
  %v1426 = vpop.f32.mrb[0].mxu0
  %1427 = vmatprep.mubr.bf16.mxu0 0
  %1428 = vmatmul.mubr.bf16.gmra.mrb[0].mxu0 %v1224
  %v1429 = vpop.f32.mrb[0].mxu0
  %v1430 = vadd.f32 %v1249, %v1429
  %v1431 = vpop.f32.mrb[0].mxu0
  %v1432 = vpop.f32.mrb[0].mxu0
  %v1433 = vadd.f32 %v1249, %v1432
  %v1434 = vpop.f32.mrb[0].mxu0
  %1435 = vmatprep.mubr.bf16.mxu0 0
  %1436 = vmatmul.mubr.bf16.gmra.mrb[0].mxu0 %v1225
  %v1437 = vpop.f32.mrb[0].mxu0
  %v1438 = vadd.f32 %v1249, %v1437
  %v1439 = vpop.f32.mrb[0].mxu0
  %v1440 = vpop.f32.mrb[0].mxu0
  %v1441 = vadd.f32 %v1249, %v1440
  %v1442 = vpop.f32.mrb[0].mxu0
  %1443 = vmatprep.mubr.bf16.mxu0 0
  %1444 = vmatmul.mubr.bf16.gmra.mrb[0].mxu0 %v1226
  %v1445 = vpop.f32.mrb[0].mxu0
  %v1446 = vadd.f32 %v1249, %v1445
  %v1447 = vpop.f32.mrb[0].mxu0
  %v1448 = vpop.f32.mrb[0].mxu0
  %v1449 = vadd.f32 %v1249, %v1448
  %v1450 = vpop.f32.mrb[0].mxu0
  %1451 = vmatprep.mubr.bf16.mxu0 0
  %1452 = vmatmul.mubr.bf16.gmra.mrb[0].mxu0 %v1227
  %v1453 = vpop.f32.mrb[0].mxu0
  %v1454 = vadd.f32 %v1249, %v1453
  %v1455 = vpop.f32.mrb[0].mxu0
  %v1456 = vpop.f32.mrb[0].mxu0
  %v1457 = vadd.f32 %v1249, %v1456
  %v1458 = vpop.f32.mrb[0].mxu0
  %1459 = vdwg.mxu0
  %v1460 = vmax.f32 %v1334, 0.0
  %v1461 = vmax.f32 %v1337, 0.0
  %v1462 = vmax.f32 %v1342, 0.0
  %v1463 = vmax.f32 %v1345, 0.0
  %v1464 = vmax.f32 %v1350, 0.0
  %v1465 = vmax.f32 %v1353, 0.0
  %v1466 = vmax.f32 %v1358, 0.0
  %v1467 = vmax.f32 %v1361, 0.0
  %v1468 = vmax.f32 %v1366, 0.0
  %v1469 = vmax.f32 %v1369, 0.0
  %v1470 = vmax.f32 %v1374, 0.0
  %v1471 = vmax.f32 %v1377, 0.0
  %v1472 = vmax.f32 %v1382, 0.0
  %v1473 = vmax.f32 %v1385, 0.0
  %v1474 = vmax.f32 %v1390, 0.0
  %v1475 = vmax.f32 %v1393, 0.0
  %v1476 = vmax.f32 %v1398, 0.0
  %v1477 = vmax.f32 %v1401, 0.0
  %v1478 = vmax.f32 %v1406, 0.0
  %v1479 = vmax.f32 %v1409, 0.0
  %v1480 = vmax.f32 %v1414, 0.0
  %v1481 = vmax.f32 %v1417, 0.0
  %v1482 = vmax.f32 %v1422, 0.0
  %v1483 = vmax.f32 %v1425, 0.0
  %v1484 = vmax.f32 %v1430, 0.0
  %v1485 = vmax.f32 %v1433, 0.0
  %v1486 = vmax.f32 %v1438, 0.0
  %v1487 = vmax.f32 %v1441, 0.0
  %v1488 = vmax.f32 %v1446, 0.0
  %v1489 = vmax.f32 %v1449, 0.0
  %v1490 = vmax.f32 %v1454, 0.0
  %v1491 = vmax.f32 %v1457, 0.0
  %1492 = vst.msk [vmem:[%s7] sm:$0xff] %vm970, %v1460
  %1493 = vst.msk [vmem:[%s7 + $0x8] sm:$0xff] %vm970, %v1461
  %1494 = vst.msk [vmem:[%s7 + $0x10] sm:$0xff] %vm970, %v1462
  %1495 = vst.msk [vmem:[%s7 + $0x18] sm:$0xff] %vm970, %v1463
  %1496 = vst.msk [vmem:[%s7 + $0x20] sm:$0xff] %vm970, %v1464
  %1497 = vst.msk [vmem:[%s7 + $0x28] sm:$0xff] %vm970, %v1465
  %1498 = vst.msk [vmem:[%s7 + $0x30] sm:$0xff] %vm970, %v1466
  %1499 = vst.msk [vmem:[%s7 + $0x38] sm:$0xff] %vm970, %v1467
  %1500 = vst.msk [vmem:[%s7 + $0x40] sm:$0xff] %vm970, %v1468
  %1501 = vst.msk [vmem:[%s7 + $0x48] sm:$0xff] %vm970, %v1469
  %1502 = vst.msk [vmem:[%s7 + $0x50] sm:$0xff] %vm970, %v1470
  %1503 = vst.msk [vmem:[%s7 + $0x58] sm:$0xff] %vm970, %v1471
  %1504 = vst.msk [vmem:[%s7 + $0x60] sm:$0xff] %vm970, %v1472
  %1505 = vst.msk [vmem:[%s7 + $0x68] sm:$0xff] %vm970, %v1473
  %1506 = vst.msk [vmem:[%s7 + $0x70] sm:$0xff] %vm970, %v1474
  %1507 = vst.msk [vmem:[%s7 + $0x78] sm:$0xff] %vm970, %v1475
  %1508 = vst.msk [vmem:[%s7 + $0x80] sm:$0xff] %vm970, %v1476
  %1509 = vst.msk [vmem:[%s7 + $0x88] sm:$0xff] %vm970, %v1477
  %1510 = vst.msk [vmem:[%s7 + $0x90] sm:$0xff] %vm970, %v1478
  %1511 = vst.msk [vmem:[%s7 + $0x98] sm:$0xff] %vm970, %v1479
  %1512 = vst.msk [vmem:[%s7 + $0xa0] sm:$0xff] %vm970, %v1480
  %1513 = vst.msk [vmem:[%s7 + $0xa8] sm:$0xff] %vm970, %v1481
  %1514 = vst.msk [vmem:[%s7 + $0xb0] sm:$0xff] %vm970, %v1482
  %1515 = vst.msk [vmem:[%s7 + $0xb8] sm:$0xff] %vm970, %v1483
  %1516 = vst.msk [vmem:[%s7 + $0xc0] sm:$0xff] %vm970, %v1484
  %1517 = vst.msk [vmem:[%s7 + $0xc8] sm:$0xff] %vm970, %v1485
  %1518 = vst.msk [vmem:[%s7 + $0xd0] sm:$0xff] %vm970, %v1486
  %1519 = vst.msk [vmem:[%s7 + $0xd8] sm:$0xff] %vm970, %v1487
  %1520 = vst.msk [vmem:[%s7 + $0xe0] sm:$0xff] %vm970, %v1488
  %1521 = vst.msk [vmem:[%s7 + $0xe8] sm:$0xff] %vm970, %v1489
  %1522 = vst.msk [vmem:[%s7 + $0xf0] sm:$0xff] %vm970, %v1490
  %1523 = vst.msk [vmem:[%s7 + $0xf8] sm:$0xff] %vm970, %v1491
  // Predicated region
  $region30: #{actor_critic_forward.1} parent=0 // pred_check
    _
  $region31: #{actor_critic_forward.1} parent=0 // pred_check_branch
    %1525 = sbr.rel (0) target = $region33
  $region32: #{actor_critic_forward.1} parent=0 // pred_region
    _
  $region33: #{actor_critic_forward.1} parent=0 // pred_fallthru
    _
  // Predicated region
  $region34: #{actor_critic_forward.1} parent=0 // pred_check
    _
  $region35: #{actor_critic_forward.1} parent=0 // pred_check_branch
    %1527 = sbr.rel (0) target = $region37
  $region36: #{actor_critic_forward.1} parent=0 // pred_region
    _
  $region37: #{actor_critic_forward.1} parent=0 // pred_fallthru
    _

</llo_original>
